<compile_context>
chip_gen: v5e
topology: v5e:2x2
jax: 0.10.0
libtpu: 0.0.40
codegen_flags: <defaults>
</compile_context>

<pallas_src>
import functools

import jax
import jax.numpy as jnp
from jax.experimental import pallas as pl
from jax.experimental.pallas import tpu as pltpu


def _round_up(x, m):
    return (x + m - 1) // m * m


def dqn_kernel(x_ref, w1_ref, b1_ref, w2_ref, b2_ref, w3_ref, b3_ref, o_ref):
    # x / weights are bf16 (MXU-native rate, half the DMA bytes); all matmul
    # accumulation is f32.  Bias-add + ReLU stay in f32 on the VPU.
    h1 = jnp.dot(x_ref[...], w1_ref[...], preferred_element_type=jnp.float32)
    h1 = jnp.maximum(h1 + b1_ref[...], 0.0)

    h2 = jnp.dot(h1.astype(jnp.bfloat16), w2_ref[...],
                 preferred_element_type=jnp.float32)
    h2 = jnp.maximum(h2 + b2_ref[...], 0.0)

    out = jnp.dot(h2.astype(jnp.bfloat16), w3_ref[...],
                  preferred_element_type=jnp.float32)
    o_ref[...] = (out + b3_ref[...]).astype(o_ref.dtype)  # lane-dense (TM, 128) store


@functools.partial(jax.jit, static_argnames=("block_m",))
def dqn_forward(x, params, *, block_m=256):
    """x: (B, state_size) float32; params: dict of weights/biases (f32)."""
    w1, b1 = params["w1"], params["b1"]
    w2, b2 = params["w2"], params["b2"]
    w3, b3 = params["w3"], params["b3"]

    B, S = x.shape
    H = w1.shape[1]
    A = w3.shape[1]

    # Pad fc1 contraction dim and fc3 output dim to full lane width (128).
    S_pad = _round_up(S, 128)
    A_pad = _round_up(A, 128)

    # Batch tile: multiple of 16 (bf16 sublane packing), capped at block_m.
    tm = min(block_m, _round_up(B, 16))
    B_pad = _round_up(B, tm)

    f32, bf16 = jnp.float32, jnp.bfloat16

    # MXU operands -> bf16 (zero-padded where needed); biases stay f32.
    xp = jnp.zeros((B_pad, S_pad), bf16).at[:B, :S].set(x.astype(bf16))
    w1p = jnp.zeros((S_pad, H), bf16).at[:S, :].set(w1.astype(bf16))
    w2p = w2.astype(bf16)
    w3p = jnp.zeros((H, A_pad), bf16).at[:, :A].set(w3.astype(bf16))
    b1p = b1.reshape(1, H).astype(f32)
    b2p = b2.reshape(1, H).astype(f32)
    b3p = jnp.zeros((1, A_pad), f32).at[:, :A].set(b3.reshape(1, A).astype(f32))

    grid = (B_pad // tm,)
    resident = lambda shape: pl.BlockSpec(shape, lambda i: (0, 0))  # stays in VMEM

    out = pl.pallas_call(
        dqn_kernel,
        out_shape=jax.ShapeDtypeStruct((B_pad, A_pad), f32),
        grid=grid,
        in_specs=[
            pl.BlockSpec((tm, S_pad), lambda i: (i, 0)),   # x tile (pipelined)
            resident((S_pad, H)), resident((1, H)),        # fc1
            resident((H, H)), resident((1, H)),            # fc2
            resident((H, A_pad)), resident((1, A_pad)),    # fc3 (padded to 128)
        ],
        out_specs=pl.BlockSpec((tm, A_pad), lambda i: (i, 0)),
        compiler_params=pltpu.CompilerParams(
            dimension_semantics=("parallel",),             # megacore on v7x
        ),
    )(xp, w1p, b1p, w2p, b2p, w3p, b3p)

    return out[:B, :A]


def init_params(key, state_size, action_size, hidden=128):
    """Deterministic init matching nn.Linear shapes (stored transposed)."""
    ks = jax.random.split(key, 6)

    def uniform(k, shape, fan_in):
        bound = 1.0 / jnp.sqrt(fan_in)
        return jax.random.uniform(k, shape, jnp.float32, -bound, bound)

    return {
        "w1": uniform(ks[0], (state_size, hidden), state_size),
        "b1": uniform(ks[1], (1, hidden), state_size),
        "w2": uniform(ks[2], (hidden, hidden), hidden),
        "b2": uniform(ks[3], (1, hidden), hidden),
        "w3": uniform(ks[4], (hidden, action_size), hidden),
        "b3": uniform(ks[5], (1, action_size), hidden),
    }


if __name__ == "__main__":
    key = jax.random.PRNGKey(0)
    k_x, k_p = jax.random.split(key)

    batch = 8
    state_size = 16
    action_size = 4

    x = jax.random.normal(k_x, (batch, state_size), dtype=jnp.float32)
    params = init_params(k_p, state_size, action_size)

    out = dqn_forward(x, params)
    jax.block_until_ready(out)
    assert out.shape == (batch, action_size)

    # Reference matching the kernel's numerics (bf16 MXU inputs, f32 accum).
    def ref_bf16(x, p):
        c = lambda a: a.astype(jnp.bfloat16)
        h1 = jnp.maximum(
            jnp.dot(c(x), c(p["w1"]), preferred_element_type=jnp.float32) + p["b1"], 0.0)
        h2 = jnp.maximum(
            jnp.dot(c(h1), c(p["w2"]), preferred_element_type=jnp.float32) + p["b2"], 0.0)
        return jnp.dot(c(h2), c(p["w3"]), preferred_element_type=jnp.float32) + p["b3"]

    # Full-precision reference (loose tolerance: kernel uses bf16 MXU inputs).
    def ref_f32(x, p):
        h1 = jnp.maximum(x @ p["w1"] + p["b1"], 0.0)
        h2 = jnp.maximum(h1 @ p["w2"] + p["b2"], 0.0)
        return h2 @ p["w3"] + p["b3"]

    assert jnp.allclose(out, ref_bf16(x, params), atol=1e-3, rtol=1e-3)
    assert jnp.allclose(out, ref_f32(x, params), atol=5e-2, rtol=5e-2)

    print("KERNEL_OK")
</pallas_src>

<mosaic_0001>
module attributes {stable_mosaic.version = 11 : i64} {
  func.func @dqn_kernel(%arg0: i32, %arg1: memref<16x128xbf16, #tpu.memory_space<vmem>>, %arg2: memref<128x128xbf16, #tpu.memory_space<vmem>>, %arg3: memref<1x128xf32, #tpu.memory_space<vmem>>, %arg4: memref<128x128xbf16, #tpu.memory_space<vmem>>, %arg5: memref<1x128xf32, #tpu.memory_space<vmem>>, %arg6: memref<128x128xbf16, #tpu.memory_space<vmem>>, %arg7: memref<1x128xf32, #tpu.memory_space<vmem>>, %arg8: memref<16x128xf32, #tpu.memory_space<vmem>>) attributes {dimension_semantics = [#tpu.dimension_semantics<parallel>], iteration_bounds = array<i64: 1>, scalar_prefetch = 0 : i64, scratch_operands = 0 : i64, tpu.core_type = #tpu.core_type<tc>, window_params = [{transform_indices = @transform_0, window_bounds = array<i64: 16, 128>}, {pipeline_mode = #tpu.pipeline_mode<synchronous>, transform_indices = @transform_1, window_bounds = array<i64: 128, 128>}, {pipeline_mode = #tpu.pipeline_mode<synchronous>, transform_indices = @transform_2, window_bounds = array<i64: 1, 128>}, {pipeline_mode = #tpu.pipeline_mode<synchronous>, transform_indices = @transform_3, window_bounds = array<i64: 128, 128>}, {pipeline_mode = #tpu.pipeline_mode<synchronous>, transform_indices = @transform_4, window_bounds = array<i64: 1, 128>}, {pipeline_mode = #tpu.pipeline_mode<synchronous>, transform_indices = @transform_5, window_bounds = array<i64: 128, 128>}, {pipeline_mode = #tpu.pipeline_mode<synchronous>, transform_indices = @transform_6, window_bounds = array<i64: 1, 128>}, {transform_indices = @transform_7, window_bounds = array<i64: 16, 128>}]} {
    %c0 = arith.constant 0 : index
    %c0_0 = arith.constant 0 : index
    %0 = vector.load %arg1[%c0, %c0_0] : memref<16x128xbf16, #tpu.memory_space<vmem>>, vector<16x128xbf16>
    %c0_1 = arith.constant 0 : index
    %c0_2 = arith.constant 0 : index
    %1 = vector.load %arg2[%c0_1, %c0_2] : memref<128x128xbf16, #tpu.memory_space<vmem>>, vector<128x128xbf16>
    %cst = arith.constant dense<0.000000e+00> : vector<16x128xf32>
    %2 = tpu.matmul %0, %1, %cst {dimension_numbers = #tpu.dot_dimension_numbers<[1], [0], [0], [1], [0, 0, 1, 1], [], []>} : vector<16x128xbf16>, vector<128x128xbf16>, vector<16x128xf32> -> vector<16x128xf32>
    %c0_3 = arith.constant 0 : index
    %c0_4 = arith.constant 0 : index
    %3 = vector.load %arg3[%c0_3, %c0_4] : memref<1x128xf32, #tpu.memory_space<vmem>>, vector<1x128xf32>
    %4 = vector.broadcast %3 : vector<1x128xf32> to vector<16x128xf32>
    %5 = arith.addf %2, %4 : vector<16x128xf32>
    %cst_5 = arith.constant 0.000000e+00 : f32
    %6 = vector.broadcast %cst_5 : f32 to vector<16x128xf32>
    %7 = arith.maximumf %5, %6 : vector<16x128xf32>
    %8 = arith.truncf %7 : vector<16x128xf32> to vector<16x128xbf16>
    %c0_6 = arith.constant 0 : index
    %c0_7 = arith.constant 0 : index
    %9 = vector.load %arg4[%c0_6, %c0_7] : memref<128x128xbf16, #tpu.memory_space<vmem>>, vector<128x128xbf16>
    %cst_8 = arith.constant dense<0.000000e+00> : vector<16x128xf32>
    %10 = tpu.matmul %8, %9, %cst_8 {dimension_numbers = #tpu.dot_dimension_numbers<[1], [0], [0], [1], [0, 0, 1, 1], [], []>} : vector<16x128xbf16>, vector<128x128xbf16>, vector<16x128xf32> -> vector<16x128xf32>
    %c0_9 = arith.constant 0 : index
    %c0_10 = arith.constant 0 : index
    %11 = vector.load %arg5[%c0_9, %c0_10] : memref<1x128xf32, #tpu.memory_space<vmem>>, vector<1x128xf32>
    %12 = vector.broadcast %11 : vector<1x128xf32> to vector<16x128xf32>
    %13 = arith.addf %10, %12 : vector<16x128xf32>
    %cst_11 = arith.constant 0.000000e+00 : f32
    %14 = vector.broadcast %cst_11 : f32 to vector<16x128xf32>
    %15 = arith.maximumf %13, %14 : vector<16x128xf32>
    %16 = arith.truncf %15 : vector<16x128xf32> to vector<16x128xbf16>
    %c0_12 = arith.constant 0 : index
    %c0_13 = arith.constant 0 : index
    %17 = vector.load %arg6[%c0_12, %c0_13] : memref<128x128xbf16, #tpu.memory_space<vmem>>, vector<128x128xbf16>
    %cst_14 = arith.constant dense<0.000000e+00> : vector<16x128xf32>
    %18 = tpu.matmul %16, %17, %cst_14 {dimension_numbers = #tpu.dot_dimension_numbers<[1], [0], [0], [1], [0, 0, 1, 1], [], []>} : vector<16x128xbf16>, vector<128x128xbf16>, vector<16x128xf32> -> vector<16x128xf32>
    %c0_15 = arith.constant 0 : index
    %c0_16 = arith.constant 0 : index
    %19 = vector.load %arg7[%c0_15, %c0_16] : memref<1x128xf32, #tpu.memory_space<vmem>>, vector<1x128xf32>
    %20 = vector.broadcast %19 : vector<1x128xf32> to vector<16x128xf32>
    %21 = arith.addf %18, %20 : vector<16x128xf32>
    %c0_17 = arith.constant 0 : index
    %c0_18 = arith.constant 0 : index
    %22 = vector.load %arg8[%c0_17, %c0_18] : memref<16x128xf32, #tpu.memory_space<vmem>>, vector<16x128xf32>
    tpu.vector_store %arg8[%c0_17, %c0_18], %21 {strides = array<i32>} : memref<16x128xf32, #tpu.memory_space<vmem>>, vector<16x128xf32>,
    return
  }
  func.func @transform_0(%arg0: i32) -> (i32, i32) {
    %c0_i32 = arith.constant 0 : i32
    %c0_i32_0 = arith.constant 0 : i32
    return %arg0, %c0_i32 : i32, i32
  }
  func.func @transform_1(%arg0: i32) -> (i32, i32) {
    %c0_i32 = arith.constant 0 : i32
    %c0_i32_0 = arith.constant 0 : i32
    %c0_i32_1 = arith.constant 0 : i32
    return %c0_i32, %c0_i32_0 : i32, i32
  }
  func.func @transform_2(%arg0: i32) -> (i32, i32) {
    %c0_i32 = arith.constant 0 : i32
    %c0_i32_0 = arith.constant 0 : i32
    %c0_i32_1 = arith.constant 0 : i32
    return %c0_i32, %c0_i32_0 : i32, i32
  }
  func.func @transform_3(%arg0: i32) -> (i32, i32) {
    %c0_i32 = arith.constant 0 : i32
    %c0_i32_0 = arith.constant 0 : i32
    %c0_i32_1 = arith.constant 0 : i32
    return %c0_i32, %c0_i32_0 : i32, i32
  }
  func.func @transform_4(%arg0: i32) -> (i32, i32) {
    %c0_i32 = arith.constant 0 : i32
    %c0_i32_0 = arith.constant 0 : i32
    %c0_i32_1 = arith.constant 0 : i32
    return %c0_i32, %c0_i32_0 : i32, i32
  }
  func.func @transform_5(%arg0: i32) -> (i32, i32) {
    %c0_i32 = arith.constant 0 : i32
    %c0_i32_0 = arith.constant 0 : i32
    %c0_i32_1 = arith.constant 0 : i32
    return %c0_i32, %c0_i32_0 : i32, i32
  }
  func.func @transform_6(%arg0: i32) -> (i32, i32) {
    %c0_i32 = arith.constant 0 : i32
    %c0_i32_0 = arith.constant 0 : i32
    %c0_i32_1 = arith.constant 0 : i32
    return %c0_i32, %c0_i32_0 : i32, i32
  }
  func.func @transform_7(%arg0: i32) -> (i32, i32) {
    %c0_i32 = arith.constant 0 : i32
    %c0_i32_0 = arith.constant 0 : i32
    return %arg0, %c0_i32 : i32, i32
  }
}

</mosaic_0001>

<llo_original>
// kernel: dqn_forward.1
$region0: #{dqn_forward.1}
  #allocation0 [shape = 'u32[]', space=smem, size = 0x4, offset = 0x4, fixed_abs, tag = 'smem constant byte address 0x4 - core index']
  #allocation1 [shape = 'u32[72,128]{1,0:T(1,128)}', space=vmem, size = 0x9000, scoped, tag = 'internal scratch']
  %s0 = inlined_call_operand.vmem [shape: bf16[16,128], index: 0, kind: input, shape index: {}]
  %s1 = inlined_call_operand.vmem [shape: bf16[128,128], index: 1, kind: input, shape index: {}]
  %s2 = inlined_call_operand.vmem [shape: f32[1,128], index: 2, kind: input, shape index: {}]
  %s3 = inlined_call_operand.vmem [shape: bf16[128,128], index: 3, kind: input, shape index: {}]
  %s4 = inlined_call_operand.vmem [shape: f32[1,128], index: 4, kind: input, shape index: {}]
  %s5 = inlined_call_operand.vmem [shape: bf16[128,128], index: 5, kind: input, shape index: {}]
  %s6 = inlined_call_operand.vmem [shape: f32[1,128], index: 6, kind: input, shape index: {}]
  %s7 = inlined_call_operand.vmem [shape: f32[16,128], index: 7, kind: output, shape index: {}]
  %s8 = sld [smem:[#allocation0]]
  $region38: #{dqn_forward.1} parent=0
    _
  %s10 = ssub.s32 1, %s8
  %s11 = scalar_select 0, %s10, %s8
  // Predicated region
  $region2: #{dqn_forward.1} parent=0 // pred_check
    _
  $region3: #{dqn_forward.1} parent=0 // pred_check_branch
    %13 = sbr.rel (0) target = $region5
  $region4: #{dqn_forward.1} parent=0 // pred_region
    _
  $region5: #{dqn_forward.1} parent=0 // pred_fallthru
    _
  // Predicated region
  $region6: #{dqn_forward.1} parent=0 // pred_check
    _
  $region7: #{dqn_forward.1} parent=0 // pred_check_branch
    %15 = sbr.rel (0) target = $region9
  $region8: #{dqn_forward.1} parent=0 // pred_region
    _
  $region9: #{dqn_forward.1} parent=0 // pred_fallthru
    _
  // Predicated region
  $region10: #{dqn_forward.1} parent=0 // pred_check
    _
  $region11: #{dqn_forward.1} parent=0 // pred_check_branch
    %17 = sbr.rel (0) target = $region13
  $region12: #{dqn_forward.1} parent=0 // pred_region
    _
  $region13: #{dqn_forward.1} parent=0 // pred_fallthru
    _
  // Predicated region
  $region14: #{dqn_forward.1} parent=0 // pred_check
    _
  $region15: #{dqn_forward.1} parent=0 // pred_check_branch
    %19 = sbr.rel (0) target = $region17
  $region16: #{dqn_forward.1} parent=0 // pred_region
    _
  $region17: #{dqn_forward.1} parent=0 // pred_fallthru
    _
  // Predicated region
  $region18: #{dqn_forward.1} parent=0 // pred_check
    _
  $region19: #{dqn_forward.1} parent=0 // pred_check_branch
    %21 = sbr.rel (0) target = $region21
  $region20: #{dqn_forward.1} parent=0 // pred_region
    _
  $region21: #{dqn_forward.1} parent=0 // pred_fallthru
    _
  // Predicated region
  $region22: #{dqn_forward.1} parent=0 // pred_check
    _
  $region23: #{dqn_forward.1} parent=0 // pred_check_branch
    %23 = sbr.rel (0) target = $region25
  $region24: #{dqn_forward.1} parent=0 // pred_region
    _
  $region25: #{dqn_forward.1} parent=0 // pred_fallthru
    _
  // Predicated region
  $region26: #{dqn_forward.1} parent=0 // pred_check
    _
  $region27: #{dqn_forward.1} parent=0 // pred_check_branch
    %25 = sbr.rel (0) target = $region29
  $region28: #{dqn_forward.1} parent=0 // pred_region
    _
  $region29: #{dqn_forward.1} parent=0 // pred_fallthru
    _
  %v26 = vld [vmem:[%s0] sm:$0xf]
  %v27 = vld [vmem:[%s0 + $0x4] sm:$0xf]
  %v28 = vld [vmem:[%s1] sm:$0xf]
  %v29 = vld [vmem:[%s1 + $0x4] sm:$0xf]
  %v30 = vld [vmem:[%s1 + $0x8] sm:$0xf]
  %v31 = vld [vmem:[%s1 + $0xc] sm:$0xf]
  %v32 = vld [vmem:[%s1 + $0x10] sm:$0xf]
  %v33 = vld [vmem:[%s1 + $0x14] sm:$0xf]
  %v34 = vld [vmem:[%s1 + $0x18] sm:$0xf]
  %v35 = vld [vmem:[%s1 + $0x1c] sm:$0xf]
  %v36 = vld [vmem:[%s1 + $0x20] sm:$0xf]
  %v37 = vld [vmem:[%s1 + $0x24] sm:$0xf]
  %v38 = vld [vmem:[%s1 + $0x28] sm:$0xf]
  %v39 = vld [vmem:[%s1 + $0x2c] sm:$0xf]
  %v40 = vld [vmem:[%s1 + $0x30] sm:$0xf]
  %v41 = vld [vmem:[%s1 + $0x34] sm:$0xf]
  %v42 = vld [vmem:[%s1 + $0x38] sm:$0xf]
  %v43 = vld [vmem:[%s1 + $0x3c] sm:$0xf]
  %v44 = vld [vmem:[%s2] sm:$0x1]
  %v46 = vperm.slane %v44, 0
  %v50 = vunpack.c.l.b16 %v26
  %v51 = vunpack.c.l.b16 %v27
  %v52 = vpack.c.b16 %v51, %v50
  %v70 = vunpack.c.l.b16 %v28
  %v71 = vunpack.c.l.b16 %v29
  %v72 = vunpack.c.l.b16 %v30
  %v73 = vunpack.c.l.b16 %v31
  %v74 = vunpack.c.l.b16 %v32
  %v75 = vunpack.c.l.b16 %v33
  %v76 = vunpack.c.l.b16 %v34
  %v77 = vunpack.c.l.b16 %v35
  %v78 = vunpack.c.l.b16 %v36
  %v79 = vunpack.c.l.b16 %v37
  %v80 = vunpack.c.l.b16 %v38
  %v81 = vunpack.c.l.b16 %v39
  %v82 = vunpack.c.l.b16 %v40
  %v83 = vunpack.c.l.b16 %v41
  %v84 = vunpack.c.l.b16 %v42
  %v85 = vunpack.c.l.b16 %v43
  %v86 = vpack.c.b16 %v71, %v70
  %v87 = vpack.c.b16 %v73, %v72
  %v88 = vpack.c.b16 %v75, %v74
  %v89 = vpack.c.b16 %v77, %v76
  %v90 = vpack.c.b16 %v79, %v78
  %v91 = vpack.c.b16 %v81, %v80
  %v92 = vpack.c.b16 %v83, %v82
  %v93 = vpack.c.b16 %v85, %v84
  %102 = vmatpush.bf16.msra.mxu0 %v93
  %103 = vmatpush.bf16.msra.mxu0 %v92
  %104 = vmatpush.bf16.msra.mxu0 %v91
  %105 = vmatpush.bf16.msra.mxu0 %v90
  %106 = vmatpush.bf16.msra.mxu0 %v89
  %107 = vmatpush.bf16.msra.mxu0 %v88
  %108 = vmatpush.bf16.msra.mxu0 %v87
  %109 = vmatpush.bf16.msra.mxu0 %v86
  %110 = vmatmul.bf16.gmra.mxu0 %v52
  %v111 = vpop.f32.mrf.mxu0
  %v112 = vadd.f32 %v46, %v111
  %v113 = vpop.f32.mrf.mxu0
  %v114 = vadd.f32 %v46, %v113
  %115 = vdwg.mxu0
  %v116 = vmax.f32 %v112, 0.0
  %v117 = vmax.f32 %v114, 0.0
  %v118 = vpack.c.bf16 %v117, %v116
  %v119 = vld [vmem:[%s3] sm:$0xf]
  %v120 = vld [vmem:[%s3 + $0x4] sm:$0xf]
  %v121 = vld [vmem:[%s3 + $0x8] sm:$0xf]
  %v122 = vld [vmem:[%s3 + $0xc] sm:$0xf]
  %v123 = vld [vmem:[%s3 + $0x10] sm:$0xf]
  %v124 = vld [vmem:[%s3 + $0x14] sm:$0xf]
  %v125 = vld [vmem:[%s3 + $0x18] sm:$0xf]
  %v126 = vld [vmem:[%s3 + $0x1c] sm:$0xf]
  %v127 = vld [vmem:[%s3 + $0x20] sm:$0xf]
  %v128 = vld [vmem:[%s3 + $0x24] sm:$0xf]
  %v129 = vld [vmem:[%s3 + $0x28] sm:$0xf]
  %v130 = vld [vmem:[%s3 + $0x2c] sm:$0xf]
  %v131 = vld [vmem:[%s3 + $0x30] sm:$0xf]
  %v132 = vld [vmem:[%s3 + $0x34] sm:$0xf]
  %v133 = vld [vmem:[%s3 + $0x38] sm:$0xf]
  %v134 = vld [vmem:[%s3 + $0x3c] sm:$0xf]
  %v135 = vld [vmem:[%s4] sm:$0x1]
  %v137 = vperm.slane %v135, 0
  %v155 = vunpack.c.l.b16 %v119
  %v156 = vunpack.c.l.b16 %v120
  %v157 = vunpack.c.l.b16 %v121
  %v158 = vunpack.c.l.b16 %v122
  %v159 = vunpack.c.l.b16 %v123
  %v160 = vunpack.c.l.b16 %v124
  %v161 = vunpack.c.l.b16 %v125
  %v162 = vunpack.c.l.b16 %v126
  %v163 = vunpack.c.l.b16 %v127
  %v164 = vunpack.c.l.b16 %v128
  %v165 = vunpack.c.l.b16 %v129
  %v166 = vunpack.c.l.b16 %v130
  %v167 = vunpack.c.l.b16 %v131
  %v168 = vunpack.c.l.b16 %v132
  %v169 = vunpack.c.l.b16 %v133
  %v170 = vunpack.c.l.b16 %v134
  %v171 = vpack.c.b16 %v156, %v155
  %v172 = vpack.c.b16 %v158, %v157
  %v173 = vpack.c.b16 %v160, %v159
  %v174 = vpack.c.b16 %v162, %v161
  %v175 = vpack.c.b16 %v164, %v163
  %v176 = vpack.c.b16 %v166, %v165
  %v177 = vpack.c.b16 %v168, %v167
  %v178 = vpack.c.b16 %v170, %v169
  %187 = vmatpush.bf16.msra.mxu0 %v178
  %188 = vmatpush.bf16.msra.mxu0 %v177
  %189 = vmatpush.bf16.msra.mxu0 %v176
  %190 = vmatpush.bf16.msra.mxu0 %v175
  %191 = vmatpush.bf16.msra.mxu0 %v174
  %192 = vmatpush.bf16.msra.mxu0 %v173
  %193 = vmatpush.bf16.msra.mxu0 %v172
  %194 = vmatpush.bf16.msra.mxu0 %v171
  %195 = vmatmul.bf16.gmra.mxu0 %v118
  %v196 = vpop.f32.mrf.mxu0
  %v197 = vadd.f32 %v137, %v196
  %v198 = vpop.f32.mrf.mxu0
  %v199 = vadd.f32 %v137, %v198
  %200 = vdwg.mxu0
  %v201 = vmax.f32 %v197, 0.0
  %v202 = vmax.f32 %v199, 0.0
  %v203 = vpack.c.bf16 %v202, %v201
  %v204 = vld [vmem:[%s5] sm:$0xf]
  %v205 = vld [vmem:[%s5 + $0x4] sm:$0xf]
  %v206 = vld [vmem:[%s5 + $0x8] sm:$0xf]
  %v207 = vld [vmem:[%s5 + $0xc] sm:$0xf]
  %v208 = vld [vmem:[%s5 + $0x10] sm:$0xf]
  %v209 = vld [vmem:[%s5 + $0x14] sm:$0xf]
  %v210 = vld [vmem:[%s5 + $0x18] sm:$0xf]
  %v211 = vld [vmem:[%s5 + $0x1c] sm:$0xf]
  %v212 = vld [vmem:[%s5 + $0x20] sm:$0xf]
  %v213 = vld [vmem:[%s5 + $0x24] sm:$0xf]
  %v214 = vld [vmem:[%s5 + $0x28] sm:$0xf]
  %v215 = vld [vmem:[%s5 + $0x2c] sm:$0xf]
  %v216 = vld [vmem:[%s5 + $0x30] sm:$0xf]
  %v217 = vld [vmem:[%s5 + $0x34] sm:$0xf]
  %v218 = vld [vmem:[%s5 + $0x38] sm:$0xf]
  %v219 = vld [vmem:[%s5 + $0x3c] sm:$0xf]
  %v220 = vld [vmem:[%s6] sm:$0x1]
  %v222 = vperm.slane %v220, 0
  %v240 = vunpack.c.l.b16 %v204
  %v241 = vunpack.c.l.b16 %v205
  %v242 = vunpack.c.l.b16 %v206
  %v243 = vunpack.c.l.b16 %v207
  %v244 = vunpack.c.l.b16 %v208
  %v245 = vunpack.c.l.b16 %v209
  %v246 = vunpack.c.l.b16 %v210
  %v247 = vunpack.c.l.b16 %v211
  %v248 = vunpack.c.l.b16 %v212
  %v249 = vunpack.c.l.b16 %v213
  %v250 = vunpack.c.l.b16 %v214
  %v251 = vunpack.c.l.b16 %v215
  %v252 = vunpack.c.l.b16 %v216
  %v253 = vunpack.c.l.b16 %v217
  %v254 = vunpack.c.l.b16 %v218
  %v255 = vunpack.c.l.b16 %v219
  %v256 = vpack.c.b16 %v241, %v240
  %v257 = vpack.c.b16 %v243, %v242
  %v258 = vpack.c.b16 %v245, %v244
  %v259 = vpack.c.b16 %v247, %v246
  %v260 = vpack.c.b16 %v249, %v248
  %v261 = vpack.c.b16 %v251, %v250
  %v262 = vpack.c.b16 %v253, %v252
  %v263 = vpack.c.b16 %v255, %v254
  %272 = vmatpush.bf16.msra.mxu0 %v263
  %273 = vmatpush.bf16.msra.mxu0 %v262
  %274 = vmatpush.bf16.msra.mxu0 %v261
  %275 = vmatpush.bf16.msra.mxu0 %v260
  %276 = vmatpush.bf16.msra.mxu0 %v259
  %277 = vmatpush.bf16.msra.mxu0 %v258
  %278 = vmatpush.bf16.msra.mxu0 %v257
  %279 = vmatpush.bf16.msra.mxu0 %v256
  %280 = vmatmul.bf16.gmra.mxu0 %v203
  %v281 = vpop.f32.mrf.mxu0
  %v282 = vadd.f32 %v222, %v281
  %v283 = vpop.f32.mrf.mxu0
  %v284 = vadd.f32 %v222, %v283
  %285 = vdwg.mxu0
  %286 = vst [vmem:[%s7] sm:$0xff] %v282
  %287 = vst [vmem:[%s7 + $0x8] sm:$0xff] %v284
  // Predicated region
  $region30: #{dqn_forward.1} parent=0 // pred_check
    _
  $region31: #{dqn_forward.1} parent=0 // pred_check_branch
    %289 = sbr.rel (0) target = $region33
  $region32: #{dqn_forward.1} parent=0 // pred_region
    _
  $region33: #{dqn_forward.1} parent=0 // pred_fallthru
    _
  // Predicated region
  $region34: #{dqn_forward.1} parent=0 // pred_check
    _
  $region35: #{dqn_forward.1} parent=0 // pred_check_branch
    %291 = sbr.rel (0) target = $region37
  $region36: #{dqn_forward.1} parent=0 // pred_region
    _
  $region37: #{dqn_forward.1} parent=0 // pred_fallthru
    _

</llo_original>
